<compile_context>
chip_gen: v6e
topology: v6e:2x2x1
jax: 0.10.0
libtpu: 0.0.40
codegen_flags: <defaults>
</compile_context>

<pallas_src>
import functools

import jax
import jax.numpy as jnp
from jax import lax
from jax.experimental import pallas as pl
from jax.experimental.pallas import tpu as pltpu

LN_EPS = 1e-5  # nn.LayerNorm default


def _patch_embed_kernel(x_ref, w_ref, g_ref, b_ref, o_ref):
    """Fused (1x1 / im2col) projection + LayerNorm over a (TB, K, TN) tile.

    x_ref: (TB, K, TN)  channels-first token tile (K = in_chans * p * p)
    w_ref: (K, D)       projection weight (resident across the grid)
    g_ref: (1, D)       LayerNorm gamma
    b_ref: (1, D)       LayerNorm beta
    o_ref: (TB, TN, D)  output tile (token-major, matches the (B, N, D) result)
    """
    w = w_ref[...]
    gamma = g_ref[...].astype(jnp.float32)
    beta = b_ref[...].astype(jnp.float32)
    # Static (trace-time) loop over the batch rows packed into this tile.
    for b in range(x_ref.shape[0]):
        # Contract over K (dim 0): no materialized (TN, K) transpose — Mosaic
        # folds the transposed-LHS feed into the MXU.
        y = lax.dot_general(
            x_ref[b], w,
            dimension_numbers=(((0,), (0,)), ((), ())),
            preferred_element_type=jnp.float32)            # (TN, D), f32 acc
        # Two-pass LayerNorm, kept for parity with nn.LayerNorm numerics.
        mean = jnp.mean(y, axis=-1, keepdims=True)
        centered = y - mean
        var = jnp.mean(centered * centered, axis=-1, keepdims=True)
        out = centered * lax.rsqrt(var + LN_EPS) * gamma + beta
        o_ref[b] = out.astype(o_ref.dtype)


def _vmem_config():
    """Return (tile_budget, vmem_limit_bytes, assume_two_tensorcores) for this chip."""
    try:
        cap = pltpu.get_tpu_info().vmem_capacity_bytes
    except Exception:
        cap = 64 * 1024 * 1024              # conservative fallback (v7x-sized)
    if cap >= 100 * 1024 * 1024:            # v5e / v6e: 128 MiB VMEM, 1 TensorCore
        return 48 * 1024 * 1024, 96 * 1024 * 1024, False
    # v7x-style part: 64 MiB physical VMEM, 2 TensorCores per chip.
    return 22 * 1024 * 1024, 44 * 1024 * 1024, True


def _tile_bytes(tb, tn, k, d, x_itemsize, out_itemsize):
    """Conservative VMEM estimate for one grid step (incl. in-kernel temporaries)."""
    x_tile = tb * k * tn * x_itemsize
    out_tile = tb * tn * d * out_itemsize
    temps = 5 * tn * d * 4                        # y / centered / normed / pre-cast f32 lives
    resident = 2 * k * d * x_itemsize + 4 * d * 4  # double-buffered weight + gamma/beta
    return 2 * (x_tile + out_tile) + temps + resident


def _pick_tiles(batch, n_tok, k, d, x_itemsize, out_itemsize, budget, want_two_steps):
    """Pick (TB, TN): batch-images-per-step and lane-dense token tile."""
    if n_tok <= 256:
        # Small-image regime: take all tokens, pack several batch images per
        # grid step so each step moves one contiguous, reasonably sized DMA.
        tn = n_tok
        tb = 1
        for cand in sorted((dv for dv in range(1, batch + 1)
                            if batch % dv == 0 and dv <= 16), reverse=True):
            if _tile_bytes(cand, tn, k, d, x_itemsize, out_itemsize) <= budget:
                tb = cand
                break
    else:
        tb = 1
        tn = 128
        for cand in (8192, 4096, 2048, 1024, 512, 256, 128):
            if cand > n_tok:
                continue
            if _tile_bytes(1, cand, k, d, x_itemsize, out_itemsize) <= budget:
                tn = cand
                break
    if want_two_steps:
        # Only 2-TensorCore (v7x-style) parts benefit from forcing >= 2 steps;
        # on single-TC parts the extra step is pure per-step overhead.
        while pl.cdiv(batch, tb) * pl.cdiv(n_tok, tn) < 2:
            if tb > 1:
                tb = max(1, tb // 2)
            elif tn > 128:
                tn = max(128, tn // 2)
            else:
                break
    return tb, tn


@functools.partial(jax.jit, static_argnames=("patch_size", "stride", "use_bf16"))
def patch_embed_forward(x, proj_weight, ln_gamma, ln_beta, *,
                        patch_size=1, stride=1, use_bf16=None):
    """Pallas PatchEmbed forward.

    x:           (B, C, H, W)            (NCHW, like PyTorch)
    proj_weight: (embed_dim, C, p, p)    (PyTorch Conv2d weight layout, no bias)
    ln_gamma:    (embed_dim,)
    ln_beta:     (embed_dim,)
    Returns (out, H_new, W_new) with out: (B, H_new*W_new, embed_dim).
    """
    assert patch_size == stride, "non-overlapping patches only (module default p=1, s=1)"
    B, C, H, W = x.shape
    D = proj_weight.shape[0]
    p = patch_size
    Hn, Wn = H // p, W // p
    n_tok = Hn * Wn
    K = C * p * p

    if p == 1:
        # Free reshape: NCHW -> (B, C, H*W) — channels-first, tokens-last.
        x_tok = x.reshape(B, C, H * W)
    else:
        # TODO(synk): for p > 1 this host-side unfold is an extra HBM read+write
        # of x before the kernel; if p > 1 ever becomes hot, move the unfold
        # into the kernel via row-strip BlockSpecs instead.
        xr = x.reshape(B, C, Hn, p, Wn, p)
        xr = jnp.transpose(xr, (0, 1, 3, 5, 2, 4))        # (B, C, p, p, Hn, Wn)
        x_tok = xr.reshape(B, K, n_tok)

    w_mat = jnp.transpose(proj_weight.reshape(D, K))      # (K, D), tiny transpose
    gamma = ln_gamma.reshape(1, D)
    beta = ln_beta.reshape(1, D)

    if use_bf16 is None:
        # Auto-enable the bf16 x/weight stream when the projection is MXU-scale;
        # accumulation / LayerNorm / output dtype stay f32.
        use_bf16 = (K >= 256 and D >= 128)
    if use_bf16:
        x_tok = x_tok.astype(jnp.bfloat16)
        w_mat = w_mat.astype(jnp.bfloat16)

    budget, vmem_limit, two_tc = _vmem_config()
    TB, TN = _pick_tiles(B, n_tok, K, D, x_tok.dtype.itemsize, x.dtype.itemsize,
                         budget, two_tc)
    grid = (pl.cdiv(B, TB), pl.cdiv(n_tok, TN))

    out = pl.pallas_call(
        _patch_embed_kernel,
        out_shape=jax.ShapeDtypeStruct((B, n_tok, D), x.dtype),
        grid_spec=pltpu.PrefetchScalarGridSpec(
            num_scalar_prefetch=0,
            grid=grid,
            in_specs=[
                pl.BlockSpec((TB, K, TN), lambda b, i: (b, 0, i)),   # x tile
                pl.BlockSpec((K, D), lambda b, i: (0, 0)),           # resident weight
                pl.BlockSpec((1, D), lambda b, i: (0, 0)),           # gamma
                pl.BlockSpec((1, D), lambda b, i: (0, 0)),           # beta
            ],
            out_specs=pl.BlockSpec((TB, TN, D), lambda b, i: (b, i, 0)),
        ),
        compiler_params=pltpu.CompilerParams(
            dimension_semantics=("parallel", "parallel"),
            vmem_limit_bytes=vmem_limit,
        ),
    )(x_tok, w_mat, gamma, beta)

    return out, Hn, Wn


def _reference_forward(x, proj_weight, ln_gamma, ln_beta, patch_size=1, stride=1):
    """Pure-JAX reference matching the PyTorch module semantics."""
    out = lax.conv_general_dilated(
        x, proj_weight,
        window_strides=(stride, stride),
        padding="VALID",
        dimension_numbers=("NCHW", "OIHW", "NCHW"),
    )
    B, D, Hn, Wn = out.shape
    out = out.reshape(B, D, Hn * Wn).transpose(0, 2, 1)   # (B, N, D)
    mean = out.mean(-1, keepdims=True)
    var = ((out - mean) ** 2).mean(-1, keepdims=True)
    out = (out - mean) / jnp.sqrt(var + LN_EPS)
    return out * ln_gamma + ln_beta, Hn, Wn


if __name__ == "__main__":
    key = jax.random.PRNGKey(0)
    k1, k2, k3 = jax.random.split(key, 3)

    # --- default path: patch_size = stride = 1 (1x1-conv projection), f32 ---
    B, C, H, W, D = 2, 32, 8, 8, 32
    x = jax.random.normal(k1, (B, C, H, W), dtype=jnp.float32)
    bound = 1.0 / jnp.sqrt(C)
    proj_weight = jax.random.uniform(k2, (D, C, 1, 1), minval=-bound, maxval=bound,
                                     dtype=jnp.float32)
    ln_gamma = jnp.ones((D,), dtype=jnp.float32)
    ln_beta = jnp.zeros((D,), dtype=jnp.float32)

    out, Hn, Wn = patch_embed_forward(x, proj_weight, ln_gamma, ln_beta,
                                      patch_size=1, stride=1)
    out = jax.block_until_ready(out)
    ref, Hr, Wr = _reference_forward(x, proj_weight, ln_gamma, ln_beta, 1, 1)
    assert out.shape == (B, Hn * Wn, D)
    assert (Hn, Wn) == (Hr, Wr)
    assert jnp.allclose(out, ref, atol=1e-4, rtol=1e-4)

    # --- p = 2 path (host im2col, same kernel), f32 ---
    B2, C2, H2, W2, D2, p2 = 2, 16, 8, 8, 32, 2
    x2 = jax.random.normal(k3, (B2, C2, H2, W2), dtype=jnp.float32)
    bound2 = 1.0 / jnp.sqrt(C2 * p2 * p2)
    w2 = jax.random.uniform(k2, (D2, C2, p2, p2), minval=-bound2, maxval=bound2,
                            dtype=jnp.float32)
    gamma2 = 1.0 + 0.1 * jax.random.normal(k1, (D2,), dtype=jnp.float32)
    beta2 = 0.1 * jax.random.normal(k3, (D2,), dtype=jnp.float32)

    out2, Hn2, Wn2 = patch_embed_forward(x2, w2, gamma2, beta2, patch_size=2, stride=2)
    out2 = jax.block_until_ready(out2)
    ref2, _, _ = _reference_forward(x2, w2, gamma2, beta2, 2, 2)
    assert out2.shape == (B2, Hn2 * Wn2, D2)
    assert jnp.allclose(out2, ref2, atol=1e-4, rtol=1e-4)

    # --- module-default channel width: auto bf16 x/weight stream (f32 accumulate) ---
    B3, C3, H3, W3, D3 = 2, 256, 8, 8, 256
    x3 = jax.random.normal(k2, (B3, C3, H3, W3), dtype=jnp.float32)
    bound3 = 1.0 / jnp.sqrt(C3)
    w3 = jax.random.uniform(k3, (D3, C3, 1, 1), minval=-bound3, maxval=bound3,
                            dtype=jnp.float32)
    gamma3 = 1.0 + 0.1 * jax.random.normal(k1, (D3,), dtype=jnp.float32)
    beta3 = 0.1 * jax.random.normal(k2, (D3,), dtype=jnp.float32)

    out3, Hn3, Wn3 = patch_embed_forward(x3, w3, gamma3, beta3, patch_size=1, stride=1)
    out3 = jax.block_until_ready(out3)
    ref3, _, _ = _reference_forward(x3, w3, gamma3, beta3, 1, 1)
    assert out3.shape == (B3, Hn3 * Wn3, D3)
    # bf16 input/weight rounding (f32 accumulation) => looser tolerance.
    assert jnp.allclose(out3, ref3, atol=3e-2, rtol=3e-2)

    print("KERNEL_OK")
</pallas_src>

<mosaic_0001>
module attributes {stable_mosaic.version = 11 : i64} {
  func.func @_patch_embed_kernel(%arg0: i32, %arg1: i32, %arg2: memref<1x32x64xf32, #tpu.memory_space<vmem>>, %arg3: memref<32x32xf32, #tpu.memory_space<vmem>>, %arg4: memref<1x32xf32, #tpu.memory_space<vmem>>, %arg5: memref<1x32xf32, #tpu.memory_space<vmem>>, %arg6: memref<1x64x32xf32, #tpu.memory_space<vmem>>) attributes {dimension_semantics = [#tpu.dimension_semantics<parallel>, #tpu.dimension_semantics<parallel>], iteration_bounds = array<i64: 2, 1>, scalar_prefetch = 0 : i64, scratch_operands = 0 : i64, tpu.core_type = #tpu.core_type<tc>, window_params = [{transform_indices = @transform_0, window_bounds = array<i64: 1, 32, 64>}, {pipeline_mode = #tpu.pipeline_mode<synchronous>, transform_indices = @transform_1, window_bounds = array<i64: 32, 32>}, {pipeline_mode = #tpu.pipeline_mode<synchronous>, transform_indices = @transform_2, window_bounds = array<i64: 1, 32>}, {pipeline_mode = #tpu.pipeline_mode<synchronous>, transform_indices = @transform_3, window_bounds = array<i64: 1, 32>}, {transform_indices = @transform_4, window_bounds = array<i64: 1, 64, 32>}]} {
    %c0 = arith.constant 0 : index
    %c0_0 = arith.constant 0 : index
    %0 = vector.load %arg3[%c0, %c0_0] : memref<32x32xf32, #tpu.memory_space<vmem>>, vector<32x32xf32>
    %c0_1 = arith.constant 0 : index
    %c0_2 = arith.constant 0 : index
    %1 = vector.load %arg4[%c0_1, %c0_2] : memref<1x32xf32, #tpu.memory_space<vmem>>, vector<1x32xf32>
    %c0_3 = arith.constant 0 : index
    %c0_4 = arith.constant 0 : index
    %2 = vector.load %arg5[%c0_3, %c0_4] : memref<1x32xf32, #tpu.memory_space<vmem>>, vector<1x32xf32>
    %c0_5 = arith.constant 0 : index
    %c0_6 = arith.constant 0 : index
    %c0_7 = arith.constant 0 : index
    %3 = vector.load %arg2[%c0_5, %c0_6, %c0_7] : memref<1x32x64xf32, #tpu.memory_space<vmem>>, vector<1x32x64xf32>
    %4 = vector.shape_cast %3 : vector<1x32x64xf32> to vector<32x64xf32>
    %cst = arith.constant dense<0.000000e+00> : vector<64x32xf32>
    %5 = tpu.matmul %4, %0, %cst {dimension_numbers = #tpu.dot_dimension_numbers<[0], [0], [1], [1], [0, 1, 1, 1], [], []>} : vector<32x64xf32>, vector<32x32xf32>, vector<64x32xf32> -> vector<64x32xf32>
    %cst_8 = arith.constant dense<0.000000e+00> : vector<64xf32>
    %6 = vector.multi_reduction <add>, %5, %cst_8 [1] : vector<64x32xf32> to vector<64xf32>
    %7 = vector.shape_cast %6 : vector<64xf32> to vector<64x1xf32>
    %cst_9 = arith.constant 3.200000e+01 : f32
    %8 = vector.broadcast %cst_9 : f32 to vector<64x1xf32>
    %9 = arith.divf %7, %8 : vector<64x1xf32>
    %10 = vector.broadcast %9 : vector<64x1xf32> to vector<64x32xf32>
    %11 = arith.subf %5, %10 : vector<64x32xf32>
    %12 = arith.mulf %11, %11 : vector<64x32xf32>
    %cst_10 = arith.constant dense<0.000000e+00> : vector<64xf32>
    %13 = vector.multi_reduction <add>, %12, %cst_10 [1] : vector<64x32xf32> to vector<64xf32>
    %14 = vector.shape_cast %13 : vector<64xf32> to vector<64x1xf32>
    %cst_11 = arith.constant 3.200000e+01 : f32
    %15 = vector.broadcast %cst_11 : f32 to vector<64x1xf32>
    %16 = arith.divf %14, %15 : vector<64x1xf32>
    %cst_12 = arith.constant 9.99999974E-6 : f32
    %17 = vector.broadcast %cst_12 : f32 to vector<64x1xf32>
    %18 = arith.addf %16, %17 : vector<64x1xf32>
    %19 = math.rsqrt %18 : vector<64x1xf32>
    %20 = vector.broadcast %19 : vector<64x1xf32> to vector<64x32xf32>
    %21 = arith.mulf %11, %20 : vector<64x32xf32>
    %22 = vector.broadcast %1 : vector<1x32xf32> to vector<64x32xf32>
    %23 = arith.mulf %21, %22 : vector<64x32xf32>
    %24 = vector.broadcast %2 : vector<1x32xf32> to vector<64x32xf32>
    %25 = arith.addf %23, %24 : vector<64x32xf32>
    %c0_13 = arith.constant 0 : index
    %c0_14 = arith.constant 0 : index
    %c0_15 = arith.constant 0 : index
    %26 = vector.load %arg6[%c0_13, %c0_14, %c0_15] : memref<1x64x32xf32, #tpu.memory_space<vmem>>, vector<1x64x32xf32>
    %27 = vector.shape_cast %26 : vector<1x64x32xf32> to vector<64x32xf32>
    %28 = vector.shape_cast %25 : vector<64x32xf32> to vector<1x64x32xf32>
    tpu.vector_store %arg6[%c0_13, %c0_14, %c0_15], %28 {strides = array<i32>} : memref<1x64x32xf32, #tpu.memory_space<vmem>>, vector<1x64x32xf32>,
    return
  }
  func.func @transform_0(%arg0: i32, %arg1: i32) -> (i32, i32, i32) {
    %c0_i32 = arith.constant 0 : i32
    %c0_i32_0 = arith.constant 0 : i32
    return %arg0, %c0_i32, %arg1 : i32, i32, i32
  }
  func.func @transform_1(%arg0: i32, %arg1: i32) -> (i32, i32) {
    %c0_i32 = arith.constant 0 : i32
    %c0_i32_0 = arith.constant 0 : i32
    %c0_i32_1 = arith.constant 0 : i32
    return %c0_i32, %c0_i32_0 : i32, i32
  }
  func.func @transform_2(%arg0: i32, %arg1: i32) -> (i32, i32) {
    %c0_i32 = arith.constant 0 : i32
    %c0_i32_0 = arith.constant 0 : i32
    %c0_i32_1 = arith.constant 0 : i32
    return %c0_i32, %c0_i32_0 : i32, i32
  }
  func.func @transform_3(%arg0: i32, %arg1: i32) -> (i32, i32) {
    %c0_i32 = arith.constant 0 : i32
    %c0_i32_0 = arith.constant 0 : i32
    %c0_i32_1 = arith.constant 0 : i32
    return %c0_i32, %c0_i32_0 : i32, i32
  }
  func.func @transform_4(%arg0: i32, %arg1: i32) -> (i32, i32, i32) {
    %c0_i32 = arith.constant 0 : i32
    %c0_i32_0 = arith.constant 0 : i32
    return %arg0, %arg1, %c0_i32 : i32, i32, i32
  }
}

</mosaic_0001>

<llo_original>
// kernel: patch_embed_forward.1
$region0: #{patch_embed_forward.1}
  #allocation0 [shape = 'u32[]', space=smem, size = 0x4, offset = 0x4, fixed_abs, tag = 'smem constant byte address 0x4 - core index']
  #allocation1 [shape = 'u32[144,128]{1,0:T(1,128)}', space=vmem, size = 0x12000, scoped, tag = 'internal scratch']
  %s0 = inlined_call_operand.vmem [shape: f32[2,32,64], index: 0, kind: input, shape index: {}]
  %s1 = inlined_call_operand.vmem [shape: f32[32,32], index: 1, kind: input, shape index: {}]
  %s2 = inlined_call_operand.vmem [shape: f32[1,32], index: 2, kind: input, shape index: {}]
  %s3 = inlined_call_operand.vmem [shape: f32[1,32], index: 3, kind: input, shape index: {}]
  %s4 = inlined_call_operand.vmem [shape: f32[2,64,32], index: 4, kind: output, shape index: {}]
  %s5 = sld [smem:[#allocation0]]
  $region49: #{patch_embed_forward.1} parent=0
    _
  %s7 = ssub.s32 1, %s5
  %s8 = scalar_select 0, %s7, %s5
  loop: start=0, step=1, limit=4
  $region2: #{patch_embed_forward.1} parent=0 // loop_pre_header
    _
  $region3: #{patch_embed_forward.1} parent=0 // loop_header
    %s10 = sphi 0, %s14
    %p11 = scmp.ge.s32.totalorder %s10, 4
    %s17 = sphi 0, %s29
    %s18 = sphi 0, %s25
    %s19 = sphi 0, %s17
    %s20 = sphi 0, %s18
    %s21 = sphi 0, %s19
    %s22 = sphi 0, %s20
    %s34 = sphi 0, %s36
    %s37 = sphi 0, %s34
    %s38 = sphi 0, %s37
    %s54 = sphi 0, %s38
    %s58 = sphi 0, %s58
    %s60 = sphi 0, %s58
    %s61 = sphi 0, %s60
    %s75 = sphi 0, %s61
    %s79 = sphi 0, %s79
    %s81 = sphi 0, %s79
    %s82 = sphi 0, %s81
    %s96 = sphi 0, %s82
    %s100 = sphi 0, %s100
    %s102 = sphi 0, %s100
    %s103 = sphi 0, %s102
    %s117 = sphi 0, %s103
    %s125 = sphi 0, %s127
    %s128 = sphi 0, %s125
    %s129 = sphi 0, %s128
    %s145 = sphi 0, %s129
  $region4: #{patch_embed_forward.1} parent=0 // loop_header_branch
    %13 = sbr.rel (%p11) target = $region8
  $region5: #{patch_embed_forward.1} parent=0 // loop_body
    %s15 = ssub.s32 %s10, 1
    %s16 = ssub.s32 %s10, 2
    %s23 = sadd.s32 1, %s18
    %p24 = scmp.ge.s32.totalorder %s23, 1
    %s25 = scalar_select %p24, 0, %s23
    %s26 = sadd.s32 1, %s17
    %s27 = scalar_select %p24, %s26, %s17
    %p28 = scmp.ge.s32.totalorder %s27, 2
    %s29 = scalar_select %p28, 0, %s27
    %s30 = ssub.s32 %s17, %s29
    %s31 = ssub.s32 %s18, %s25
    %s32 = sor.u32 %s30, %s31
    %p33 = scmp.eq.s32.totalorder %s32, 0
    %s35 = sadd.s32 %s34, 1
    %s36 = scalar_select %p33, %s34, %s35
    %p39 = pneg %p33
    %p40 = scmp.eq.s32.totalorder %s10, 1
    %p41 = por %p39, %p40
    %p42 = scmp.ne.s32.totalorder %s34, %s37
    %p43 = scmp.eq.s32.totalorder %s10, 0
    %p44 = por %p42, %p43
    %p45 = scmp.ne.s32.totalorder %s34, %s37
    %p46 = scmp.eq.s32.totalorder %s15, 1
    %p47 = por %p45, %p46
    %p48 = scmp.ne.s32.totalorder %s37, %s38
    %p49 = scmp.eq.s32.totalorder %s15, 0
    %p50 = por %p48, %p49
    %p51 = scmp.ne.s32.totalorder %s37, %s38
    %p52 = scmp.eq.s32.totalorder %s16, 1
    %p53 = por %p51, %p52
    %p55 = scmp.ne.s32.totalorder %s38, %s54
    %p56 = scmp.eq.s32.totalorder %s16, 0
    %p57 = por %p55, %p56
    %s59 = sadd.s32 %s58, 1
    %p62 = scmp.eq.s32.totalorder %s10, 1
    %p63 = scmp.ne.s32.totalorder %s58, %s60
    %p64 = scmp.eq.s32.totalorder %s10, 0
    %p65 = por %p63, %p64
    %p66 = scmp.ne.s32.totalorder %s58, %s60
    %p67 = scmp.eq.s32.totalorder %s15, 1
    %p68 = por %p66, %p67
    %p69 = scmp.ne.s32.totalorder %s60, %s61
    %p70 = scmp.eq.s32.totalorder %s15, 0
    %p71 = por %p69, %p70
    %p72 = scmp.ne.s32.totalorder %s60, %s61
    %p73 = scmp.eq.s32.totalorder %s16, 1
    %p74 = por %p72, %p73
    %p76 = scmp.ne.s32.totalorder %s61, %s75
    %p77 = scmp.eq.s32.totalorder %s16, 0
    %p78 = por %p76, %p77
    %s80 = sadd.s32 %s79, 1
    %p83 = scmp.eq.s32.totalorder %s10, 1
    %p84 = scmp.ne.s32.totalorder %s79, %s81
    %p85 = scmp.eq.s32.totalorder %s10, 0
    %p86 = por %p84, %p85
    %p87 = scmp.ne.s32.totalorder %s79, %s81
    %p88 = scmp.eq.s32.totalorder %s15, 1
    %p89 = por %p87, %p88
    %p90 = scmp.ne.s32.totalorder %s81, %s82
    %p91 = scmp.eq.s32.totalorder %s15, 0
    %p92 = por %p90, %p91
    %p93 = scmp.ne.s32.totalorder %s81, %s82
    %p94 = scmp.eq.s32.totalorder %s16, 1
    %p95 = por %p93, %p94
    %p97 = scmp.ne.s32.totalorder %s82, %s96
    %p98 = scmp.eq.s32.totalorder %s16, 0
    %p99 = por %p97, %p98
    %s101 = sadd.s32 %s100, 1
    %p104 = scmp.eq.s32.totalorder %s10, 1
    %p105 = scmp.ne.s32.totalorder %s100, %s102
    %p106 = scmp.eq.s32.totalorder %s10, 0
    %p107 = por %p105, %p106
    %p108 = scmp.ne.s32.totalorder %s100, %s102
    %p109 = scmp.eq.s32.totalorder %s15, 1
    %p110 = por %p108, %p109
    %p111 = scmp.ne.s32.totalorder %s102, %s103
    %p112 = scmp.eq.s32.totalorder %s15, 0
    %p113 = por %p111, %p112
    %p114 = scmp.ne.s32.totalorder %s102, %s103
    %p115 = scmp.eq.s32.totalorder %s16, 1
    %p116 = por %p114, %p115
    %p118 = scmp.ne.s32.totalorder %s103, %s117
    %p119 = scmp.eq.s32.totalorder %s16, 0
    %p120 = por %p118, %p119
    %s121 = ssub.s32 %s17, %s29
    %s122 = ssub.s32 %s18, %s25
    %s123 = sor.u32 %s121, %s122
    %p124 = scmp.eq.s32.totalorder %s123, 0
    %s126 = sadd.s32 %s125, 1
    %s127 = scalar_select %p124, %s125, %s126
    %p130 = pneg %p124
    %p131 = scmp.eq.s32.totalorder %s10, 1
    %p132 = por %p130, %p131
    %p133 = scmp.ne.s32.totalorder %s125, %s128
    %p134 = scmp.eq.s32.totalorder %s10, 0
    %p135 = por %p133, %p134
    %p136 = scmp.ne.s32.totalorder %s125, %s128
    %p137 = scmp.eq.s32.totalorder %s15, 1
    %p138 = por %p136, %p137
    %p139 = scmp.ne.s32.totalorder %s128, %s129
    %p140 = scmp.eq.s32.totalorder %s15, 0
    %p141 = por %p139, %p140
    %p142 = scmp.ne.s32.totalorder %s128, %s129
    %p143 = scmp.eq.s32.totalorder %s16, 1
    %p144 = por %p142, %p143
    %p146 = scmp.ne.s32.totalorder %s129, %s145
    %p147 = scmp.eq.s32.totalorder %s16, 0
    %p148 = por %p146, %p147
    %p149 = scmp.le.s32.totalorder 1, %s10
    %p150 = scmp.lt.s32.totalorder %s10, 3
    %p151 = pnand %p149, %p150
    %p152 = pneg %p151
    // Predicated region
    $region9: #{patch_embed_forward.1} parent=5 // pred_check
      _
    $region10: #{patch_embed_forward.1} parent=5 // pred_check_branch
      %154 = sbr.rel (%p151) target = $region12
    $region11: #{patch_embed_forward.1} parent=5 // pred_region
      %s155 = ssub.s32 %s10, 1
      // Predicated region
      $region13: #{patch_embed_forward.1} parent=11 // pred_check
        %p156 = pneg %p71
      $region14: #{patch_embed_forward.1} parent=11 // pred_check_branch
        %158 = sbr.rel (%p156) target = $region16
      $region15: #{patch_embed_forward.1} parent=11 // pred_region
        _
      $region16: #{patch_embed_forward.1} parent=11 // pred_fallthru
        _
      // Predicated region
      $region17: #{patch_embed_forward.1} parent=11 // pred_check
        %p159 = pneg %p92
      $region18: #{patch_embed_forward.1} parent=11 // pred_check_branch
        %161 = sbr.rel (%p159) target = $region20
      $region19: #{patch_embed_forward.1} parent=11 // pred_region
        _
      $region20: #{patch_embed_forward.1} parent=11 // pred_fallthru
        _
      // Predicated region
      $region21: #{patch_embed_forward.1} parent=11 // pred_check
        %p162 = pneg %p113
      $region22: #{patch_embed_forward.1} parent=11 // pred_check_branch
        %164 = sbr.rel (%p162) target = $region24
      $region23: #{patch_embed_forward.1} parent=11 // pred_region
        _
      $region24: #{patch_embed_forward.1} parent=11 // pred_fallthru
        _
    $region12: #{patch_embed_forward.1} parent=5 // pred_fallthru
      _
    %p165 = scmp.lt.s32.totalorder %s10, 2
    // Predicated region
    $region25: #{patch_embed_forward.1} parent=5 // pred_check
      %p166 = pneg %p165
    $region26: #{patch_embed_forward.1} parent=5 // pred_check_branch
      %168 = sbr.rel (%p166) target = $region28
    $region27: #{patch_embed_forward.1} parent=5 // pred_region
      // Predicated region
      $region29: #{patch_embed_forward.1} parent=27 // pred_check
        %p169 = pneg %p44
      $region30: #{patch_embed_forward.1} parent=27 // pred_check_branch
        %171 = sbr.rel (%p169) target = $region32
      $region31: #{patch_embed_forward.1} parent=27 // pred_region
        %p172 = scmp.lt.s32.totalorder %s17, 1
        %s173 = scalar_select %p172, %s17, 1
        %p174 = scmp.lt.s32.totalorder %s18, 0
        %s175 = scalar_select %p174, %s18, 0
        %s176 = smul.addr %s173, 4
        %s177 = sadd.s32 %s175, %s176
        %s178 = smul.addr %s177, 8
        %s179 = scalar_lea.vmem %s0, %s178
      $region32: #{patch_embed_forward.1} parent=27 // pred_fallthru
        _
    $region28: #{patch_embed_forward.1} parent=5 // pred_fallthru
      _
    %p180 = scmp.le.s32.totalorder 1, %s10
    %p181 = scmp.lt.s32.totalorder %s10, 3
    %p182 = pnand %p180, %p181
    %p183 = pneg %p182
    // Predicated region
    $region33: #{patch_embed_forward.1} parent=5 // pred_check
      _
    $region34: #{patch_embed_forward.1} parent=5 // pred_check_branch
      %185 = sbr.rel (%p182) target = $region36
    $region35: #{patch_embed_forward.1} parent=5 // pred_region
      %s186 = ssub.s32 %s10, 1
      %p187 = scmp.lt.s32.totalorder %s19, 1
      %s188 = scalar_select %p187, %s19, 1
      %p189 = scmp.lt.s32.totalorder %s20, 0
      %s190 = scalar_select %p189, %s20, 0
      %s191 = smul.addr %s188, 4
      %s192 = sadd.s32 %s190, %s191
      %s193 = smul.addr %s192, 8
      %s194 = scalar_lea.vmem %s0, %s193
      %p195 = pneg %p50
      %p196 = pneg %p47
      %p197 = pneg %p71
      %p198 = pneg %p68
      %p199 = pneg %p92
      %p200 = pneg %p89
      %p201 = pneg %p113
      %p202 = pneg %p110
      %p203 = pneg %p141
      %p204 = pneg %p138
      %s205 = smul.u32 8, %s20
      %p206 = scmp.lt.s32.totalorder %s19, 1
      %s207 = scalar_select %p206, %s19, 1
      %p208 = scmp.lt.s32.totalorder %s205, 7
      %s209 = scalar_select %p208, %s205, 7
      %s210 = smul.addr %s207, 8
      %s211 = sadd.s32 %s209, %s210
      %s212 = smul.addr %s211, 8
      %s213 = scalar_lea.vmem %s4, %s212
      %p214 = scmp.lt.s32.totalorder %s19, 1
      %s215 = scalar_select %p214, %s19, 1
      %p216 = scmp.lt.s32.totalorder %s20, 0
      %s217 = scalar_select %p216, %s20, 0
      %s218 = smul.addr %s215, 4
      %s219 = sadd.s32 %s217, %s218
      %s220 = smul.addr %s219, 8
      %s221 = scalar_lea.vmem %s0, %s220
      %s222 = smul.u32 8, %s20
      %p223 = scmp.lt.s32.totalorder %s19, 1
      %s224 = scalar_select %p223, %s19, 1
      %p225 = scmp.lt.s32.totalorder %s222, 7
      %s226 = scalar_select %p225, %s222, 7
      %s227 = smul.addr %s224, 8
      %s228 = sadd.s32 %s226, %s227
      %s229 = smul.addr %s228, 8
      %s230 = scalar_lea.vmem %s4, %s229
      %s231 = smul.u32 8, %s20
      %v232 = vld [vmem:[%s1] sm:$0xff]
      %v233 = vld [vmem:[%s1 + $0x8] sm:$0xff]
      %v234 = vld [vmem:[%s1 + $0x10] sm:$0xff]
      %v235 = vld [vmem:[%s1 + $0x18] sm:$0xff]
      %v236 = vld [vmem:[%s2] sm:$0x1]
      %v237 = vld [vmem:[%s3] sm:$0x1]
      %v238 = vld [vmem:[%s221] sm:$0xff]
      %v239 = vld [vmem:[%s221 + $0x8] sm:$0xff]
      %v240 = vld [vmem:[%s221 + $0x10] sm:$0xff]
      %v241 = vld [vmem:[%s221 + $0x18] sm:$0xff]
      %242 = vxpose.xlu0.b32.start [1/16] %v238, 128
      %243 = vxpose.xlu0.b32.cont [2/16] %v239, 128
      %244 = vxpose.xlu0.b32.cont [3/16] %v240, 128
      %245 = vxpose.xlu0.b32.cont [4/16] %v241, 128
      %246 = vxpose.xlu0.b32.cont [5/16] 0.0, 128
      %247 = vxpose.xlu0.b32.cont [6/16] 0.0, 128
      %248 = vxpose.xlu0.b32.cont [7/16] 0.0, 128
      %249 = vxpose.xlu0.b32.cont [8/16] 0.0, 128
      %250 = vxpose.xlu0.b32.cont [9/16] 0.0, 128
      %251 = vxpose.xlu0.b32.cont [10/16] 0.0, 128
      %252 = vxpose.xlu0.b32.cont [11/16] 0.0, 128
      %253 = vxpose.xlu0.b32.cont [12/16] 0.0, 128
      %254 = vxpose.xlu0.b32.cont [13/16] 0.0, 128
      %255 = vxpose.xlu0.b32.cont [14/16] 0.0, 128
      %256 = vxpose.xlu0.b32.cont [15/16] 0.0, 128
      %257 = vxpose.xlu0.b32.end [16/16] 0.0, 128
      %v258 = vpop.trf.xlu0
      %v259 = vpop.trf.xlu0
      %v260 = vpop.trf.xlu0
      %v261 = vpop.trf.xlu0
      %v262 = vpop.trf.xlu0
      %v263 = vpop.trf.xlu0
      %v264 = vpop.trf.xlu0
      %v265 = vpop.trf.xlu0
      %v266 = vpop.trf.xlu0
      %v267 = vpop.trf.xlu0
      %v268 = vpop.trf.xlu0
      %v269 = vpop.trf.xlu0
      %v270 = vpop.trf.xlu0
      %v271 = vpop.trf.xlu0
      %v272 = vpop.trf.xlu0
      %v273 = vpop.trf.xlu0
      %vm274 = vcmask 261120
      %v276 = vsel %vm274, %v258, 0
      %v279 = vsel %vm274, %v259, 0
      %v282 = vsel %vm274, %v260, 0
      %v285 = vsel %vm274, %v261, 0
      %v288 = vsel %vm274, %v262, 0
      %v291 = vsel %vm274, %v263, 0
      %v294 = vsel %vm274, %v264, 0
      %v297 = vsel %vm274, %v265, 0
      %299 = vmatprep.subr.mxu0 0.0
      %300 = vmatpush1.msra.mxu0 0.0
      %301 = vmatprep.subr.mxu0 0.0
      %302 = vmatpush1.msra.mxu0 0.0
      %303 = vmatprep.subr.mxu0 0.0
      %304 = vmatpush1.msra.mxu0 0.0
      %305 = vmatprep.subr.mxu0 0.0
      %306 = vmatpush1.msra.mxu0 0.0
      %307 = vmatprep.subr.mxu0 0.0
      %308 = vmatpush1.msra.mxu0 0.0
      %309 = vmatprep.subr.mxu0 0.0
      %310 = vmatpush1.msra.mxu0 0.0
      %311 = vmatprep.subr.mxu0 0.0
      %312 = vmatpush1.msra.mxu0 0.0
      %313 = vmatprep.subr.mxu0 0.0
      %314 = vmatpush1.msra.mxu0 0.0
      %315 = vmatprep.subr.mxu0 0.0
      %316 = vmatpush1.msra.mxu0 0.0
      %317 = vmatprep.subr.mxu0 0.0
      %318 = vmatpush1.msra.mxu0 0.0
      %319 = vmatprep.subr.mxu0 0.0
      %320 = vmatpush1.msra.mxu0 0.0
      %321 = vmatprep.subr.mxu0 0.0
      %322 = vmatpush1.msra.mxu0 0.0
      %323 = vmatprep.subr.mxu0 0.0
      %324 = vmatpush1.msra.mxu0 %v235
      %325 = vmatprep.subr.mxu0 0.0
      %326 = vmatpush1.msra.mxu0 %v234
      %327 = vmatprep.subr.mxu0 0.0
      %328 = vmatpush1.msra.mxu0 %v233
      %329 = vmatprep.subr.mxu0 0.0
      %330 = vmatpush1.msra.mxu0 %v232
      %331 = vmatprep.subr.mxu0 0.0
      %332 = vmatpush2.msra.mxu0 0.0
      %333 = vmatprep.subr.mxu0 0.0
      %334 = vmatpush2.msra.mxu0 0.0
      %335 = vmatprep.subr.mxu0 0.0
      %336 = vmatpush2.msra.mxu0 0.0
      %337 = vmatprep.subr.mxu0 0.0
      %338 = vmatpush2.msra.mxu0 0.0
      %339 = vmatprep.subr.mxu0 0.0
      %340 = vmatpush2.msra.mxu0 0.0
      %341 = vmatprep.subr.mxu0 0.0
      %342 = vmatpush2.msra.mxu0 0.0
      %343 = vmatprep.subr.mxu0 0.0
      %344 = vmatpush2.msra.mxu0 0.0
      %345 = vmatprep.subr.mxu0 0.0
      %346 = vmatpush2.msra.mxu0 0.0
      %347 = vmatprep.subr.mxu0 0.0
      %348 = vmatpush2.msra.mxu0 0.0
      %349 = vmatprep.subr.mxu0 0.0
      %350 = vmatpush2.msra.mxu0 0.0
      %351 = vmatprep.subr.mxu0 0.0
      %352 = vmatpush2.msra.mxu0 0.0
      %353 = vmatprep.subr.mxu0 0.0
      %354 = vmatpush2.msra.mxu0 0.0
      %355 = vmatprep.subr.mxu0 0.0
      %356 = vmatpush2.msra.mxu0 0.0
      %357 = vmatprep.subr.mxu0 0.0
      %358 = vmatpush2.msra.mxu0 0.0
      %359 = vmatprep.subr.mxu0 0.0
      %360 = vmatpush2.msra.mxu0 0.0
      %361 = vmatprep.subr.mxu0 0.0
      %362 = vmatpush2.msra.mxu0 0.0
      %363 = vmatprep.mubr.f32.mxu0 0.0
      %364 = vmatmul.mubr.f32.gmra.mxu0 %v276
      %v365 = vpop.f32.mrf.mxu0
      %v366 = vadd.f32 0.0, %v365
      %v367 = vpop.f32.mrf.mxu0
      %368 = vmatprep.mubr.f32.mxu0 0.0
      %369 = vmatmul.mubr.f32.gmra.mxu0 %v279
      %v370 = vpop.f32.mrf.mxu0
      %v371 = vadd.f32 0.0, %v370
      %v372 = vpop.f32.mrf.mxu0
      %373 = vmatprep.mubr.f32.mxu0 0.0
      %374 = vmatmul.mubr.f32.gmra.mxu0 %v282
      %v375 = vpop.f32.mrf.mxu0
      %v376 = vadd.f32 0.0, %v375
      %v377 = vpop.f32.mrf.mxu0
      %378 = vmatprep.mubr.f32.mxu0 0.0
      %379 = vmatmul.mubr.f32.gmra.mxu0 %v285
      %v380 = vpop.f32.mrf.mxu0
      %v381 = vadd.f32 0.0, %v380
      %v382 = vpop.f32.mrf.mxu0
      %383 = vmatprep.mubr.f32.mxu0 0.0
      %384 = vmatmul.mubr.f32.gmra.mxu0 %v288
      %v385 = vpop.f32.mrf.mxu0
      %v386 = vadd.f32 0.0, %v385
      %v387 = vpop.f32.mrf.mxu0
      %388 = vmatprep.mubr.f32.mxu0 0.0
      %389 = vmatmul.mubr.f32.gmra.mxu0 %v291
      %v390 = vpop.f32.mrf.mxu0
      %v391 = vadd.f32 0.0, %v390
      %v392 = vpop.f32.mrf.mxu0
      %393 = vmatprep.mubr.f32.mxu0 0.0
      %394 = vmatmul.mubr.f32.gmra.mxu0 %v294
      %v395 = vpop.f32.mrf.mxu0
      %v396 = vadd.f32 0.0, %v395
      %v397 = vpop.f32.mrf.mxu0
      %398 = vmatprep.mubr.f32.mxu0 0.0
      %399 = vmatmul.mubr.f32.gmra.mxu0 %v297
      %v400 = vpop.f32.mrf.mxu0
      %v401 = vadd.f32 0.0, %v400
      %v402 = vpop.f32.mrf.mxu0
      %403 = vdwg.mxu0
      %v404 = vsel %vm274, %v366, 0.0
      %405 = vadd.xlane.f32.xlu0 %v404
      %v406 = vpop.xlane.xlu0 %405
      %v407 = vsel %vm274, %v371, 0.0
      %408 = vadd.xlane.f32.xlu0 %v407
      %v409 = vpop.xlane.xlu0 %408
      %v410 = vsel %vm274, %v376, 0.0
      %411 = vadd.xlane.f32.xlu0 %v410
      %v412 = vpop.xlane.xlu0 %411
      %v413 = vsel %vm274, %v381, 0.0
      %414 = vadd.xlane.f32.xlu0 %v413
      %v415 = vpop.xlane.xlu0 %414
      %v416 = vsel %vm274, %v386, 0.0
      %417 = vadd.xlane.f32.xlu0 %v416
      %v418 = vpop.xlane.xlu0 %417
      %v419 = vsel %vm274, %v391, 0.0
      %420 = vadd.xlane.f32.xlu0 %v419
      %v421 = vpop.xlane.xlu0 %420
      %v422 = vsel %vm274, %v396, 0.0
      %423 = vadd.xlane.f32.xlu0 %v422
      %v424 = vpop.xlane.xlu0 %423
      %v425 = vsel %vm274, %v401, 0.0
      %426 = vadd.xlane.f32.xlu0 %v425
      %v427 = vpop.xlane.xlu0 %426
      %v428 = vrcp.pop 32.0
      %v429 = vmul.f32 %v406, %v428
      %v430 = vmul.f32 %v409, %v428
      %v431 = vmul.f32 %v412, %v428
      %v432 = vmul.f32 %v415, %v428
      %v433 = vmul.f32 %v418, %v428
      %v434 = vmul.f32 %v421, %v428
      %v435 = vmul.f32 %v424, %v428
      %v436 = vmul.f32 %v427, %v428
      %v437 = vsub.f32 %v366, %v429
      %v438 = vsub.f32 %v371, %v430
      %v439 = vsub.f32 %v376, %v431
      %v440 = vsub.f32 %v381, %v432
      %v441 = vsub.f32 %v386, %v433
      %v442 = vsub.f32 %v391, %v434
      %v443 = vsub.f32 %v396, %v435
      %v444 = vsub.f32 %v401, %v436
      %v445 = vmul.f32 %v437, %v437
      %v446 = vmul.f32 %v438, %v438
      %v447 = vmul.f32 %v439, %v439
      %v448 = vmul.f32 %v440, %v440
      %v449 = vmul.f32 %v441, %v441
      %v450 = vmul.f32 %v442, %v442
      %v451 = vmul.f32 %v443, %v443
      %v452 = vmul.f32 %v444, %v444
      %v453 = vsel %vm274, %v445, 0.0
      %454 = vadd.xlane.f32.xlu0 %v453
      %v455 = vpop.xlane.xlu0 %454
      %v456 = vsel %vm274, %v446, 0.0
      %457 = vadd.xlane.f32.xlu0 %v456
      %v458 = vpop.xlane.xlu0 %457
      %v459 = vsel %vm274, %v447, 0.0
      %460 = vadd.xlane.f32.xlu0 %v459
      %v461 = vpop.xlane.xlu0 %460
      %v462 = vsel %vm274, %v448, 0.0
      %463 = vadd.xlane.f32.xlu0 %v462
      %v464 = vpop.xlane.xlu0 %463
      %v465 = vsel %vm274, %v449, 0.0
      %466 = vadd.xlane.f32.xlu0 %v465
      %v467 = vpop.xlane.xlu0 %466
      %v468 = vsel %vm274, %v450, 0.0
      %469 = vadd.xlane.f32.xlu0 %v468
      %v470 = vpop.xlane.xlu0 %469
      %v471 = vsel %vm274, %v451, 0.0
      %472 = vadd.xlane.f32.xlu0 %v471
      %v473 = vpop.xlane.xlu0 %472
      %v474 = vsel %vm274, %v452, 0.0
      %475 = vadd.xlane.f32.xlu0 %v474
      %v476 = vpop.xlane.xlu0 %475
      %v477 = vmul.f32 %v455, %v428
      %v478 = vmul.f32 %v458, %v428
      %v479 = vmul.f32 %v461, %v428
      %v480 = vmul.f32 %v464, %v428
      %v481 = vmul.f32 %v467, %v428
      %v482 = vmul.f32 %v470, %v428
      %v483 = vmul.f32 %v473, %v428
      %v484 = vmul.f32 %v476, %v428
      %v485 = vadd.f32 %v477, 1e-05
      %v486 = vadd.f32 %v478, 1e-05
      %v487 = vadd.f32 %v479, 1e-05
      %v488 = vadd.f32 %v480, 1e-05
      %v489 = vadd.f32 %v481, 1e-05
      %v490 = vadd.f32 %v482, 1e-05
      %v491 = vadd.f32 %v483, 1e-05
      %v492 = vadd.f32 %v484, 1e-05
      %v493 = vrsqrt.pop %v485
      %v494 = vrsqrt.pop %v486
      %v495 = vrsqrt.pop %v487
      %v496 = vrsqrt.pop %v488
      %v497 = vrsqrt.pop %v489
      %v498 = vrsqrt.pop %v490
      %v499 = vrsqrt.pop %v491
      %v500 = vrsqrt.pop %v492
      %v501 = vmul.f32 %v437, %v493
      %v502 = vmul.f32 %v438, %v494
      %v503 = vmul.f32 %v439, %v495
      %v504 = vmul.f32 %v440, %v496
      %v505 = vmul.f32 %v441, %v497
      %v506 = vmul.f32 %v442, %v498
      %v507 = vmul.f32 %v443, %v499
      %v508 = vmul.f32 %v444, %v500
      %v510 = vlaneseq
      %v511 = vshrl.u32 %v510, 7
      %v512 = vsub.s32 0, %v511
      %v513 = vrot.slane %v236, %v512
      %v515 = vmul.f32 %v501, %v513
      %v516 = vmul.f32 %v502, %v513
      %v517 = vmul.f32 %v503, %v513
      %v518 = vmul.f32 %v504, %v513
      %v519 = vmul.f32 %v505, %v513
      %v520 = vmul.f32 %v506, %v513
      %v521 = vmul.f32 %v507, %v513
      %v522 = vmul.f32 %v508, %v513
      %v524 = vlaneseq
      %v525 = vshrl.u32 %v524, 7
      %v526 = vsub.s32 0, %v525
      %v527 = vrot.slane %v237, %v526
      %v529 = vadd.f32 %v515, %v527
      %v530 = vadd.f32 %v516, %v527
      %v531 = vadd.f32 %v517, %v527
      %v532 = vadd.f32 %v518, %v527
      %v533 = vadd.f32 %v519, %v527
      %v534 = vadd.f32 %v520, %v527
      %v535 = vadd.f32 %v521, %v527
      %v536 = vadd.f32 %v522, %v527
      %537 = vst.msk [vmem:[%s230] sm:$0xff] %vm274, %v529
      %538 = vst.msk [vmem:[%s230 + $0x8] sm:$0xff] %vm274, %v530
      %539 = vst.msk [vmem:[%s230 + $0x10] sm:$0xff] %vm274, %v531
      %540 = vst.msk [vmem:[%s230 + $0x18] sm:$0xff] %vm274, %v532
      %541 = vst.msk [vmem:[%s230 + $0x20] sm:$0xff] %vm274, %v533
      %542 = vst.msk [vmem:[%s230 + $0x28] sm:$0xff] %vm274, %v534
      %543 = vst.msk [vmem:[%s230 + $0x30] sm:$0xff] %vm274, %v535
      %544 = vst.msk [vmem:[%s230 + $0x38] sm:$0xff] %vm274, %v536
      %s545 = smul.u32 8, %s20
      %p546 = scmp.lt.s32.totalorder %s19, 1
      %s547 = scalar_select %p546, %s19, 1
      %p548 = scmp.lt.s32.totalorder %s545, 7
      %s549 = scalar_select %p548, %s545, 7
      %s550 = smul.addr %s547, 8
      %s551 = sadd.s32 %s549, %s550
      %s552 = smul.addr %s551, 8
      %s553 = scalar_lea.vmem %s4, %s552
      // Predicated region
      $region37: #{patch_embed_forward.1} parent=35 // pred_check
        %p554 = pneg %p138
      $region38: #{patch_embed_forward.1} parent=35 // pred_check_branch
        %556 = sbr.rel (%p554) target = $region40
      $region39: #{patch_embed_forward.1} parent=35 // pred_region
        %s557 = smul.u32 8, %s20
      $region40: #{patch_embed_forward.1} parent=35 // pred_fallthru
        _
    $region36: #{patch_embed_forward.1} parent=5 // pred_fallthru
      _
    %p558 = scmp.le.s32.totalorder 2, %s10
    // Predicated region
    $region41: #{patch_embed_forward.1} parent=5 // pred_check
      %p559 = pneg %p558
    $region42: #{patch_embed_forward.1} parent=5 // pred_check_branch
      %561 = sbr.rel (%p559) target = $region44
    $region43: #{patch_embed_forward.1} parent=5 // pred_region
      %s562 = ssub.s32 %s10, 2
      // Predicated region
      $region45: #{patch_embed_forward.1} parent=43 // pred_check
        %p563 = pneg %p144
      $region46: #{patch_embed_forward.1} parent=43 // pred_check_branch
        %565 = sbr.rel (%p563) target = $region48
      $region47: #{patch_embed_forward.1} parent=43 // pred_region
        %s566 = smul.u32 8, %s22
        %p567 = scmp.lt.s32.totalorder %s21, 1
        %s568 = scalar_select %p567, %s21, 1
        %p569 = scmp.lt.s32.totalorder %s566, 7
        %s570 = scalar_select %p569, %s566, 7
        %s571 = smul.addr %s568, 8
        %s572 = sadd.s32 %s570, %s571
        %s573 = smul.addr %s572, 8
        %s574 = scalar_lea.vmem %s4, %s573
      $region48: #{patch_embed_forward.1} parent=43 // pred_fallthru
        _
    $region44: #{patch_embed_forward.1} parent=5 // pred_fallthru
      _
  $region6: #{patch_embed_forward.1} parent=0 // loop_footer
    %s14 = sadd.s32 1, %s10
  $region7: #{patch_embed_forward.1} parent=0 // loop_footer_branch
    %9 = sbr.rel target = $region3
  $region8: #{patch_embed_forward.1} parent=0 // loop_exit
    _

</llo_original>
